<compile_context>
chip_gen: v7x
topology: tpu7x:2x2x1
jax: 0.10.0
libtpu: 0.0.40
codegen_flags: <defaults>
</compile_context>

<pallas_src>
import jax
import jax.numpy as jnp
from jax.experimental import pallas as pl
from jax.experimental.pallas import tpu as pltpu

LANE = 128


def _round_up(n, m):
    return ((n + m - 1) // m) * m


def _cdiv(a, b):
    return -(-a // b)


def dqn_kernel(x_ref,
               w1_ref, b1_ref,
               w2_ref, b2_ref,
               w3_ref, b3_ref,
               w4_ref, b4_ref,
               w5_ref, b5_ref,
               out_ref):
    """Whole (padded) 5-layer MLP fused for one batch tile.

    Matmuls run in bf16 on the MXU with f32 accumulation; bias-add / ReLU stay
    in f32, activations are re-cast to bf16 between layers. The batch tile is
    split into two independent sub-tiles (when alignment allows) so the MXU and
    the VPU epilogue of consecutive layers can overlap.
    """
    layers = ((w1_ref, b1_ref), (w2_ref, b2_ref), (w3_ref, b3_ref),
              (w4_ref, b4_ref), (w5_ref, b5_ref))
    tb = x_ref.shape[0]

    if tb % 32 == 0 and tb >= 64:
        half = tb // 2
        subs = (pl.ds(0, half), pl.ds(half, half))
    else:
        subs = (pl.ds(0, tb),)

    # x already bf16 (cast host-side).
    hs = [x_ref[s, :] for s in subs]
    n_layers = len(layers)
    for li, (w_ref, b_ref) in enumerate(layers):
        w = w_ref[...]
        b = b_ref[...]
        acts = [jnp.dot(h, w, preferred_element_type=jnp.float32) + b for h in hs]
        if li + 1 < n_layers:
            hs = [jnp.maximum(a, 0.0).astype(jnp.bfloat16) for a in acts]
        else:
            for s, a in zip(subs, acts):
                out_ref[s, :] = a.astype(out_ref.dtype)


def _pick_tiling(B, block_b):
    """Pick (batch_tile, padded_batch): >=2 balanced grid steps for non-tiny
    batches (v7x megacore), tiles a multiple of 32 (bf16 sublane pairs for the
    in-kernel 2-way sub-tile split), padding kept below one tile."""
    if B <= 16:
        tb = _round_up(max(B, 8), 16)
        return tb, tb
    n_steps = max(2, _cdiv(B, block_b))
    tb = _round_up(_cdiv(B, n_steps), 32)
    b_pad = tb * _cdiv(B, tb)
    return tb, b_pad


def dqn_forward(x, packed_params, *, action_size, block_b=4096):
    """x: (B, state_size) f32; packed_params: flat [w1,b1,...,w5,b5] with
    weights bf16 (in_pad, out_pad) and biases f32 (1, out_pad)."""
    B, S = x.shape
    out_pad = packed_params[-1].shape[-1]          # 128-lane padded output

    tb, b_pad = _pick_tiling(B, block_b)
    xb = x.astype(jnp.bfloat16)                    # halve the x DMA
    if b_pad != B:
        xb = jnp.pad(xb, ((0, b_pad - B), (0, 0)))
    grid = (b_pad // tb,)

    x_spec = pl.BlockSpec((tb, S), lambda i: (i, 0))
    # Constant index maps -> weights/biases stay VMEM-resident across tiles.
    param_specs = [pl.BlockSpec(p.shape, lambda i: (0, 0)) for p in packed_params]
    out_spec = pl.BlockSpec((tb, out_pad), lambda i: (i, 0))

    flops = 2 * b_pad * sum(
        packed_params[2 * l].shape[0] * packed_params[2 * l].shape[1]
        for l in range(5))
    bytes_accessed = (xb.size * xb.dtype.itemsize
                      + sum(int(p.size) * p.dtype.itemsize for p in packed_params)
                      + b_pad * out_pad * 2)       # bf16 output stream

    out = pl.pallas_call(
        dqn_kernel,
        out_shape=jax.ShapeDtypeStruct((b_pad, out_pad), jnp.bfloat16),
        grid=grid,
        in_specs=[x_spec] + param_specs,
        out_specs=out_spec,
        compiler_params=pltpu.CompilerParams(
            dimension_semantics=("parallel",),
            vmem_limit_bytes=40 * 1024 * 1024),
        cost_estimate=pl.CostEstimate(
            flops=flops, transcendentals=0, bytes_accessed=bytes_accessed),
    )(xb, *packed_params)

    return out[:B, :action_size].astype(jnp.float32)


def init_params(key, state_size, action_size):
    """Deterministic PyTorch-nn.Linear-style (uniform) init, logical shapes.
    Weights are stored as (in, out) = transpose of torch's (out, in)."""
    dims = [state_size, 256, 128, 64, 32, action_size]
    params = []
    for i in range(5):
        fan_in, fan_out = dims[i], dims[i + 1]
        key, kw, kb = jax.random.split(key, 3)
        bound = 1.0 / (fan_in ** 0.5)
        w = jax.random.uniform(kw, (fan_in, fan_out), jnp.float32, -bound, bound)
        b = jax.random.uniform(kb, (fan_out,), jnp.float32, -bound, bound)
        params.append((w, b))
    return params


def pack_params(params, state_size):
    """Zero-pad every feature width below 128 up to 128 lanes and cast weights
    to bf16 (biases stay f32). Padding is exact: padded weight rows/cols are 0
    and ReLU(0)=0, so padded activation lanes carry exact zeros."""
    out_dims = [w.shape[1] for (w, _) in params]
    pdims = [state_size] + [_round_up(d, LANE) for d in out_dims]
    packed = []
    for i, (w, b) in enumerate(params):
        in_dim, out_dim = w.shape
        wp = jnp.zeros((pdims[i], pdims[i + 1]), jnp.float32)
        wp = wp.at[:in_dim, :out_dim].set(w)
        bp = jnp.zeros((1, pdims[i + 1]), jnp.float32)
        bp = bp.at[0, :out_dim].set(b)
        packed.extend([wp.astype(jnp.bfloat16), bp])
    return packed


def dqn_reference(x, packed, action_size):
    """Pure-JAX reference using the same packed bf16 weights / f32 biases.
    Note: matches the kernel's bf16-activation numerics; differs from a true
    f32 torch DQN by O(1e-2) relative."""
    h = x.astype(jnp.bfloat16)
    for i in range(4):
        a = jnp.dot(h, packed[2 * i], preferred_element_type=jnp.float32) + packed[2 * i + 1]
        h = jnp.maximum(a, 0.0).astype(jnp.bfloat16)
    y = jnp.dot(h, packed[8], preferred_element_type=jnp.float32) + packed[9]
    return y[:, :action_size]


if __name__ == "__main__":
    key = jax.random.PRNGKey(0)
    state_size, action_size = 16, 4

    params = init_params(key, state_size, action_size)
    packed = pack_params(params, state_size)

    # Small demo batch (single-step path) and a mid-size batch that exercises
    # the multi-step, sub-tile-split, and padding-balanced paths.
    for batch in (8, 300):
        key, kx = jax.random.split(key)
        x = jax.random.normal(kx, (batch, state_size), jnp.float32)

        out = jax.block_until_ready(dqn_forward(x, packed, action_size=action_size))
        ref = dqn_reference(x, packed, action_size)

        assert out.shape == (batch, action_size)
        assert jnp.allclose(out, ref, atol=2e-2, rtol=2e-2), f"mismatch vs reference (batch={batch})"

    print("KERNEL_OK")
</pallas_src>

<mosaic_0001>
module attributes {stable_mosaic.version = 11 : i64} {
  func.func @dqn_kernel(%arg0: i32, %arg1: memref<16x16xbf16, #tpu.memory_space<vmem>>, %arg2: memref<16x256xbf16, #tpu.memory_space<vmem>>, %arg3: memref<1x256xf32, #tpu.memory_space<vmem>>, %arg4: memref<256x128xbf16, #tpu.memory_space<vmem>>, %arg5: memref<1x128xf32, #tpu.memory_space<vmem>>, %arg6: memref<128x128xbf16, #tpu.memory_space<vmem>>, %arg7: memref<1x128xf32, #tpu.memory_space<vmem>>, %arg8: memref<128x128xbf16, #tpu.memory_space<vmem>>, %arg9: memref<1x128xf32, #tpu.memory_space<vmem>>, %arg10: memref<128x128xbf16, #tpu.memory_space<vmem>>, %arg11: memref<1x128xf32, #tpu.memory_space<vmem>>, %arg12: memref<16x128xbf16, #tpu.memory_space<vmem>>) attributes {dimension_semantics = [#tpu.dimension_semantics<parallel>], iteration_bounds = array<i64: 1>, scalar_prefetch = 0 : i64, scratch_operands = 0 : i64, tpu.core_type = #tpu.core_type<tc>, window_params = [{transform_indices = @transform_0, window_bounds = array<i64: 16, 16>}, {pipeline_mode = #tpu.pipeline_mode<synchronous>, transform_indices = @transform_1, window_bounds = array<i64: 16, 256>}, {pipeline_mode = #tpu.pipeline_mode<synchronous>, transform_indices = @transform_2, window_bounds = array<i64: 1, 256>}, {pipeline_mode = #tpu.pipeline_mode<synchronous>, transform_indices = @transform_3, window_bounds = array<i64: 256, 128>}, {pipeline_mode = #tpu.pipeline_mode<synchronous>, transform_indices = @transform_4, window_bounds = array<i64: 1, 128>}, {pipeline_mode = #tpu.pipeline_mode<synchronous>, transform_indices = @transform_5, window_bounds = array<i64: 128, 128>}, {pipeline_mode = #tpu.pipeline_mode<synchronous>, transform_indices = @transform_6, window_bounds = array<i64: 1, 128>}, {pipeline_mode = #tpu.pipeline_mode<synchronous>, transform_indices = @transform_7, window_bounds = array<i64: 128, 128>}, {pipeline_mode = #tpu.pipeline_mode<synchronous>, transform_indices = @transform_8, window_bounds = array<i64: 1, 128>}, {pipeline_mode = #tpu.pipeline_mode<synchronous>, transform_indices = @transform_9, window_bounds = array<i64: 128, 128>}, {pipeline_mode = #tpu.pipeline_mode<synchronous>, transform_indices = @transform_10, window_bounds = array<i64: 1, 128>}, {transform_indices = @transform_11, window_bounds = array<i64: 16, 128>}]} {
    %c0 = arith.constant 0 : index
    %c0_0 = arith.constant 0 : index
    %0 = vector.load %arg1[%c0, %c0_0] : memref<16x16xbf16, #tpu.memory_space<vmem>>, vector<16x16xbf16>
    %c0_1 = arith.constant 0 : index
    %c0_2 = arith.constant 0 : index
    %1 = vector.load %arg2[%c0_1, %c0_2] : memref<16x256xbf16, #tpu.memory_space<vmem>>, vector<16x256xbf16>
    %c0_3 = arith.constant 0 : index
    %c0_4 = arith.constant 0 : index
    %2 = vector.load %arg3[%c0_3, %c0_4] : memref<1x256xf32, #tpu.memory_space<vmem>>, vector<1x256xf32>
    %cst = arith.constant dense<0.000000e+00> : vector<16x256xf32>
    %3 = tpu.matmul %0, %1, %cst {dimension_numbers = #tpu.dot_dimension_numbers<[1], [0], [0], [1], [0, 0, 1, 1], [], []>} : vector<16x16xbf16>, vector<16x256xbf16>, vector<16x256xf32> -> vector<16x256xf32>
    %4 = vector.broadcast %2 : vector<1x256xf32> to vector<16x256xf32>
    %5 = arith.addf %3, %4 : vector<16x256xf32>
    %cst_5 = arith.constant 0.000000e+00 : f32
    %6 = vector.broadcast %cst_5 : f32 to vector<16x256xf32>
    %7 = arith.maximumf %5, %6 : vector<16x256xf32>
    %8 = arith.truncf %7 : vector<16x256xf32> to vector<16x256xbf16>
    %c0_6 = arith.constant 0 : index
    %c0_7 = arith.constant 0 : index
    %9 = vector.load %arg4[%c0_6, %c0_7] : memref<256x128xbf16, #tpu.memory_space<vmem>>, vector<256x128xbf16>
    %c0_8 = arith.constant 0 : index
    %c0_9 = arith.constant 0 : index
    %10 = vector.load %arg5[%c0_8, %c0_9] : memref<1x128xf32, #tpu.memory_space<vmem>>, vector<1x128xf32>
    %cst_10 = arith.constant dense<0.000000e+00> : vector<16x128xf32>
    %11 = tpu.matmul %8, %9, %cst_10 {dimension_numbers = #tpu.dot_dimension_numbers<[1], [0], [0], [1], [0, 0, 1, 1], [], []>} : vector<16x256xbf16>, vector<256x128xbf16>, vector<16x128xf32> -> vector<16x128xf32>
    %12 = vector.broadcast %10 : vector<1x128xf32> to vector<16x128xf32>
    %13 = arith.addf %11, %12 : vector<16x128xf32>
    %cst_11 = arith.constant 0.000000e+00 : f32
    %14 = vector.broadcast %cst_11 : f32 to vector<16x128xf32>
    %15 = arith.maximumf %13, %14 : vector<16x128xf32>
    %16 = arith.truncf %15 : vector<16x128xf32> to vector<16x128xbf16>
    %c0_12 = arith.constant 0 : index
    %c0_13 = arith.constant 0 : index
    %17 = vector.load %arg6[%c0_12, %c0_13] : memref<128x128xbf16, #tpu.memory_space<vmem>>, vector<128x128xbf16>
    %c0_14 = arith.constant 0 : index
    %c0_15 = arith.constant 0 : index
    %18 = vector.load %arg7[%c0_14, %c0_15] : memref<1x128xf32, #tpu.memory_space<vmem>>, vector<1x128xf32>
    %cst_16 = arith.constant dense<0.000000e+00> : vector<16x128xf32>
    %19 = tpu.matmul %16, %17, %cst_16 {dimension_numbers = #tpu.dot_dimension_numbers<[1], [0], [0], [1], [0, 0, 1, 1], [], []>} : vector<16x128xbf16>, vector<128x128xbf16>, vector<16x128xf32> -> vector<16x128xf32>
    %20 = vector.broadcast %18 : vector<1x128xf32> to vector<16x128xf32>
    %21 = arith.addf %19, %20 : vector<16x128xf32>
    %cst_17 = arith.constant 0.000000e+00 : f32
    %22 = vector.broadcast %cst_17 : f32 to vector<16x128xf32>
    %23 = arith.maximumf %21, %22 : vector<16x128xf32>
    %24 = arith.truncf %23 : vector<16x128xf32> to vector<16x128xbf16>
    %c0_18 = arith.constant 0 : index
    %c0_19 = arith.constant 0 : index
    %25 = vector.load %arg8[%c0_18, %c0_19] : memref<128x128xbf16, #tpu.memory_space<vmem>>, vector<128x128xbf16>
    %c0_20 = arith.constant 0 : index
    %c0_21 = arith.constant 0 : index
    %26 = vector.load %arg9[%c0_20, %c0_21] : memref<1x128xf32, #tpu.memory_space<vmem>>, vector<1x128xf32>
    %cst_22 = arith.constant dense<0.000000e+00> : vector<16x128xf32>
    %27 = tpu.matmul %24, %25, %cst_22 {dimension_numbers = #tpu.dot_dimension_numbers<[1], [0], [0], [1], [0, 0, 1, 1], [], []>} : vector<16x128xbf16>, vector<128x128xbf16>, vector<16x128xf32> -> vector<16x128xf32>
    %28 = vector.broadcast %26 : vector<1x128xf32> to vector<16x128xf32>
    %29 = arith.addf %27, %28 : vector<16x128xf32>
    %cst_23 = arith.constant 0.000000e+00 : f32
    %30 = vector.broadcast %cst_23 : f32 to vector<16x128xf32>
    %31 = arith.maximumf %29, %30 : vector<16x128xf32>
    %32 = arith.truncf %31 : vector<16x128xf32> to vector<16x128xbf16>
    %c0_24 = arith.constant 0 : index
    %c0_25 = arith.constant 0 : index
    %33 = vector.load %arg10[%c0_24, %c0_25] : memref<128x128xbf16, #tpu.memory_space<vmem>>, vector<128x128xbf16>
    %c0_26 = arith.constant 0 : index
    %c0_27 = arith.constant 0 : index
    %34 = vector.load %arg11[%c0_26, %c0_27] : memref<1x128xf32, #tpu.memory_space<vmem>>, vector<1x128xf32>
    %cst_28 = arith.constant dense<0.000000e+00> : vector<16x128xf32>
    %35 = tpu.matmul %32, %33, %cst_28 {dimension_numbers = #tpu.dot_dimension_numbers<[1], [0], [0], [1], [0, 0, 1, 1], [], []>} : vector<16x128xbf16>, vector<128x128xbf16>, vector<16x128xf32> -> vector<16x128xf32>
    %36 = vector.broadcast %34 : vector<1x128xf32> to vector<16x128xf32>
    %37 = arith.addf %35, %36 : vector<16x128xf32>
    %38 = arith.truncf %37 : vector<16x128xf32> to vector<16x128xbf16>
    %c0_29 = arith.constant 0 : index
    %c0_30 = arith.constant 0 : index
    %39 = vector.load %arg12[%c0_29, %c0_30] : memref<16x128xbf16, #tpu.memory_space<vmem>>, vector<16x128xbf16>
    tpu.vector_store %arg12[%c0_29, %c0_30], %38 {strides = array<i32>} : memref<16x128xbf16, #tpu.memory_space<vmem>>, vector<16x128xbf16>,
    return
  }
  func.func @transform_0(%arg0: i32) -> (i32, i32) {
    %c0_i32 = arith.constant 0 : i32
    %c0_i32_0 = arith.constant 0 : i32
    return %arg0, %c0_i32 : i32, i32
  }
  func.func @transform_1(%arg0: i32) -> (i32, i32) {
    %c0_i32 = arith.constant 0 : i32
    %c0_i32_0 = arith.constant 0 : i32
    %c0_i32_1 = arith.constant 0 : i32
    return %c0_i32, %c0_i32_0 : i32, i32
  }
  func.func @transform_2(%arg0: i32) -> (i32, i32) {
    %c0_i32 = arith.constant 0 : i32
    %c0_i32_0 = arith.constant 0 : i32
    %c0_i32_1 = arith.constant 0 : i32
    return %c0_i32, %c0_i32_0 : i32, i32
  }
  func.func @transform_3(%arg0: i32) -> (i32, i32) {
    %c0_i32 = arith.constant 0 : i32
    %c0_i32_0 = arith.constant 0 : i32
    %c0_i32_1 = arith.constant 0 : i32
    return %c0_i32, %c0_i32_0 : i32, i32
  }
  func.func @transform_4(%arg0: i32) -> (i32, i32) {
    %c0_i32 = arith.constant 0 : i32
    %c0_i32_0 = arith.constant 0 : i32
    %c0_i32_1 = arith.constant 0 : i32
    return %c0_i32, %c0_i32_0 : i32, i32
  }
  func.func @transform_5(%arg0: i32) -> (i32, i32) {
    %c0_i32 = arith.constant 0 : i32
    %c0_i32_0 = arith.constant 0 : i32
    %c0_i32_1 = arith.constant 0 : i32
    return %c0_i32, %c0_i32_0 : i32, i32
  }
  func.func @transform_6(%arg0: i32) -> (i32, i32) {
    %c0_i32 = arith.constant 0 : i32
    %c0_i32_0 = arith.constant 0 : i32
    %c0_i32_1 = arith.constant 0 : i32
    return %c0_i32, %c0_i32_0 : i32, i32
  }
  func.func @transform_7(%arg0: i32) -> (i32, i32) {
    %c0_i32 = arith.constant 0 : i32
    %c0_i32_0 = arith.constant 0 : i32
    %c0_i32_1 = arith.constant 0 : i32
    return %c0_i32, %c0_i32_0 : i32, i32
  }
  func.func @transform_8(%arg0: i32) -> (i32, i32) {
    %c0_i32 = arith.constant 0 : i32
    %c0_i32_0 = arith.constant 0 : i32
    %c0_i32_1 = arith.constant 0 : i32
    return %c0_i32, %c0_i32_0 : i32, i32
  }
  func.func @transform_9(%arg0: i32) -> (i32, i32) {
    %c0_i32 = arith.constant 0 : i32
    %c0_i32_0 = arith.constant 0 : i32
    %c0_i32_1 = arith.constant 0 : i32
    return %c0_i32, %c0_i32_0 : i32, i32
  }
  func.func @transform_10(%arg0: i32) -> (i32, i32) {
    %c0_i32 = arith.constant 0 : i32
    %c0_i32_0 = arith.constant 0 : i32
    %c0_i32_1 = arith.constant 0 : i32
    return %c0_i32, %c0_i32_0 : i32, i32
  }
  func.func @transform_11(%arg0: i32) -> (i32, i32) {
    %c0_i32 = arith.constant 0 : i32
    %c0_i32_0 = arith.constant 0 : i32
    return %arg0, %c0_i32 : i32, i32
  }
}

</mosaic_0001>

<llo_original>
// kernel: tpu_custom_call.1
$region0: #{tpu_custom_call.1}
  #allocation0 [shape = 'u32[]', space=smem, size = 0x4, offset = 0x4, fixed_abs, tag = 'smem constant byte address 0x4 - core index']
  #allocation1 [shape = 'u32[144,128]{1,0:T(1,128)}', space=vmem, size = 0x12000, scoped, tag = 'internal scratch']
  %s0 = inlined_call_operand.hbm [shape: bf16[16,16], index: 0, kind: input, shape index: {}]
  %s1 = inlined_call_operand.hbm [shape: bf16[16,256], index: 1, kind: input, shape index: {}]
  %s2 = inlined_call_operand.vmem [shape: f32[1,256], index: 2, kind: input, shape index: {}]
  %s3 = inlined_call_operand.hbm [shape: bf16[256,128], index: 3, kind: input, shape index: {}]
  %s4 = inlined_call_operand.vmem [shape: f32[1,128], index: 4, kind: input, shape index: {}]
  %s5 = inlined_call_operand.hbm [shape: bf16[128,128], index: 5, kind: input, shape index: {}]
  %s6 = inlined_call_operand.vmem [shape: f32[1,128], index: 6, kind: input, shape index: {}]
  %s7 = inlined_call_operand.hbm [shape: bf16[128,128], index: 7, kind: input, shape index: {}]
  %s8 = inlined_call_operand.vmem [shape: f32[1,128], index: 8, kind: input, shape index: {}]
  %s9 = inlined_call_operand.hbm [shape: bf16[128,128], index: 9, kind: input, shape index: {}]
  %s10 = inlined_call_operand.vmem [shape: f32[1,128], index: 10, kind: input, shape index: {}]
  %s11 = inlined_call_operand.hbm [shape: bf16[16,128], index: 11, kind: output, shape index: {}]
  %s12 = sld [smem:[#allocation0]]
  $region78: #{tpu_custom_call.1} parent=0
    _
  %s14 = ssub.s32 1, %s12
  %s15 = scalar_select 0, %s14, %s12
  $region1: #{tpu_custom_call.1} parent=0
    #allocation2 [shape = 'u8[4096]{0}', space=vmem, size = 0x1000, scoped, tag = 'input window, operand 0, single buffered']
    #allocation3 [shape = 's32[1]{0}', space=sflag, size = 0x4, scoped, tag = 'scoped memory for tpu_custom_call.1']
    #allocation4 [shape = 's32[1]{0}', space=sflag, size = 0x4, scoped, tag = 'scoped memory for tpu_custom_call.1']
    #allocation5 [shape = 'u8[8192]{0}', space=vmem, size = 0x2000, scoped, tag = 'input window, operand 1, single buffered']
    #allocation6 [shape = 's32[1]{0}', space=sflag, size = 0x4, scoped, tag = 'scoped memory for tpu_custom_call.1']
    #allocation7 [shape = 'u8[65536]{0}', space=vmem, size = 0x10000, scoped, tag = 'input window, operand 3, single buffered']
    #allocation8 [shape = 'u8[32768]{0}', space=vmem, size = 0x8000, scoped, tag = 'input window, operand 5, single buffered']
    #allocation9 [shape = 's32[1]{0}', space=sflag, size = 0x4, scoped, tag = 'scoped memory for tpu_custom_call.1']
    #allocation10 [shape = 'u8[32768]{0}', space=vmem, size = 0x8000, scoped, tag = 'input window, operand 7, single buffered']
    #allocation11 [shape = 'u8[32768]{0}', space=vmem, size = 0x8000, scoped, tag = 'input window, operand 9, single buffered']
    #allocation12 [shape = 's32[1]{0}', space=sflag, size = 0x4, scoped, tag = 'scoped memory for tpu_custom_call.1']
    #allocation13 [shape = 'u8[4096]{0}', space=vmem, size = 0x1000, scoped, tag = 'output window, operand 0, single buffered']
    %16 = vsyncpa [#allocation3], 0
    %17 = vsyncpa [#allocation6], 0
    %18 = vsyncpa [#allocation9], 0
    %19 = vsyncpa [#allocation12], 0
    %20 = vsyncpa [#allocation4], 0
    // Predicated region
    $region2: #{tpu_custom_call.1} parent=1 // pred_check
      _
    $region3: #{tpu_custom_call.1} parent=1 // pred_check_branch
      %22 = sbr.rel (0) target = $region5
    $region4: #{tpu_custom_call.1} parent=1 // pred_region
      %s24 = ssub.s32 128, 128
      %25 = vsyncadd [#allocation3], %s24
      %s26 = sshll.u32 [#allocation2], 4
      %s27 = int_to_ptr.vmem [resolvable:$true] %s26
      %32 = dma.hbm_to_vmem [thread:$0]  %s0, 128, %s27, [#allocation3], 64, 64, 4
    $region5: #{tpu_custom_call.1} parent=1 // pred_fallthru
      _
    // Predicated region
    $region6: #{tpu_custom_call.1} parent=1 // pred_check
      _
    $region7: #{tpu_custom_call.1} parent=1 // pred_check_branch
      %34 = sbr.rel (0) target = $region9
    $region8: #{tpu_custom_call.1} parent=1 // pred_region
      %s36 = ssub.s32 256, 256
      %37 = vsyncadd [#allocation6], %s36
      %s38 = sshll.u32 [#allocation5], 4
      %s39 = int_to_ptr.vmem [resolvable:$true] %s38
      %44 = dma.hbm_to_vmem [thread:$0]  %s1, 256, %s39, [#allocation6], 128, 128, 8
    $region9: #{tpu_custom_call.1} parent=1 // pred_fallthru
      _
    // Predicated region
    $region10: #{tpu_custom_call.1} parent=1 // pred_check
      _
    $region11: #{tpu_custom_call.1} parent=1 // pred_check_branch
      %46 = sbr.rel (0) target = $region13
    $region12: #{tpu_custom_call.1} parent=1 // pred_region
      _
    $region13: #{tpu_custom_call.1} parent=1 // pred_fallthru
      _
    // Predicated region
    $region14: #{tpu_custom_call.1} parent=1 // pred_check
      _
    $region15: #{tpu_custom_call.1} parent=1 // pred_check_branch
      %48 = sbr.rel (0) target = $region17
    $region16: #{tpu_custom_call.1} parent=1 // pred_region
      %s50 = ssub.s32 2048, 2048
      %51 = vsyncadd [#allocation6], %s50
      %s52 = sshll.u32 [#allocation7], 4
      %s53 = int_to_ptr.vmem [resolvable:$true] %s52
      %58 = dma.hbm_to_vmem [thread:$0]  %s3, 2048, %s53, [#allocation6], 64, 64, 4
    $region17: #{tpu_custom_call.1} parent=1 // pred_fallthru
      _
    // Predicated region
    $region18: #{tpu_custom_call.1} parent=1 // pred_check
      _
    $region19: #{tpu_custom_call.1} parent=1 // pred_check_branch
      %60 = sbr.rel (0) target = $region21
    $region20: #{tpu_custom_call.1} parent=1 // pred_region
      _
    $region21: #{tpu_custom_call.1} parent=1 // pred_fallthru
      _
    // Predicated region
    $region22: #{tpu_custom_call.1} parent=1 // pred_check
      _
    $region23: #{tpu_custom_call.1} parent=1 // pred_check_branch
      %62 = sbr.rel (0) target = $region25
    $region24: #{tpu_custom_call.1} parent=1 // pred_region
      %s64 = ssub.s32 1024, 1024
      %65 = vsyncadd [#allocation9], %s64
      %s66 = sshll.u32 [#allocation8], 4
      %s67 = int_to_ptr.vmem [resolvable:$true] %s66
      %72 = dma.hbm_to_vmem [thread:$0]  %s5, 1024, %s67, [#allocation9], 64, 64, 4
    $region25: #{tpu_custom_call.1} parent=1 // pred_fallthru
      _
    // Predicated region
    $region26: #{tpu_custom_call.1} parent=1 // pred_check
      _
    $region27: #{tpu_custom_call.1} parent=1 // pred_check_branch
      %74 = sbr.rel (0) target = $region29
    $region28: #{tpu_custom_call.1} parent=1 // pred_region
      _
    $region29: #{tpu_custom_call.1} parent=1 // pred_fallthru
      _
    // Predicated region
    $region30: #{tpu_custom_call.1} parent=1 // pred_check
      _
    $region31: #{tpu_custom_call.1} parent=1 // pred_check_branch
      %76 = sbr.rel (0) target = $region33
    $region32: #{tpu_custom_call.1} parent=1 // pred_region
      %s78 = ssub.s32 1024, 1024
      %79 = vsyncadd [#allocation9], %s78
      %s80 = sshll.u32 [#allocation10], 4
      %s81 = int_to_ptr.vmem [resolvable:$true] %s80
      %86 = dma.hbm_to_vmem [thread:$0]  %s7, 1024, %s81, [#allocation9], 64, 64, 4
    $region33: #{tpu_custom_call.1} parent=1 // pred_fallthru
      _
    // Predicated region
    $region34: #{tpu_custom_call.1} parent=1 // pred_check
      _
    $region35: #{tpu_custom_call.1} parent=1 // pred_check_branch
      %88 = sbr.rel (0) target = $region37
    $region36: #{tpu_custom_call.1} parent=1 // pred_region
      _
    $region37: #{tpu_custom_call.1} parent=1 // pred_fallthru
      _
    // Predicated region
    $region38: #{tpu_custom_call.1} parent=1 // pred_check
      _
    $region39: #{tpu_custom_call.1} parent=1 // pred_check_branch
      %90 = sbr.rel (0) target = $region41
    $region40: #{tpu_custom_call.1} parent=1 // pred_region
      %s92 = ssub.s32 1024, 1024
      %93 = vsyncadd [#allocation12], %s92
      %s94 = sshll.u32 [#allocation11], 4
      %s95 = int_to_ptr.vmem [resolvable:$true] %s94
      %100 = dma.hbm_to_vmem [thread:$0]  %s9, 1024, %s95, [#allocation12], 64, 64, 4
    $region41: #{tpu_custom_call.1} parent=1 // pred_fallthru
      _
    // Predicated region
    $region42: #{tpu_custom_call.1} parent=1 // pred_check
      _
    $region43: #{tpu_custom_call.1} parent=1 // pred_check_branch
      %102 = sbr.rel (0) target = $region45
    $region44: #{tpu_custom_call.1} parent=1 // pred_region
      _
    $region45: #{tpu_custom_call.1} parent=1 // pred_fallthru
      _
    // Predicated region
    $region46: #{tpu_custom_call.1} parent=1 // pred_check
      _
    $region47: #{tpu_custom_call.1} parent=1 // pred_check_branch
      %104 = sbr.rel (0) target = $region49
    $region48: #{tpu_custom_call.1} parent=1 // pred_region
      %105 = dma.done [#allocation3], 128
    $region49: #{tpu_custom_call.1} parent=1 // pred_fallthru
      _
    // Predicated region
    $region50: #{tpu_custom_call.1} parent=1 // pred_check
      _
    $region51: #{tpu_custom_call.1} parent=1 // pred_check_branch
      %107 = sbr.rel (0) target = $region53
    $region52: #{tpu_custom_call.1} parent=1 // pred_region
      %108 = dma.done [#allocation6], 256
    $region53: #{tpu_custom_call.1} parent=1 // pred_fallthru
      _
    // Predicated region
    $region54: #{tpu_custom_call.1} parent=1 // pred_check
      _
    $region55: #{tpu_custom_call.1} parent=1 // pred_check_branch
      %110 = sbr.rel (0) target = $region57
    $region56: #{tpu_custom_call.1} parent=1 // pred_region
      %111 = dma.done [#allocation6], 2048
    $region57: #{tpu_custom_call.1} parent=1 // pred_fallthru
      _
    // Predicated region
    $region58: #{tpu_custom_call.1} parent=1 // pred_check
      _
    $region59: #{tpu_custom_call.1} parent=1 // pred_check_branch
      %113 = sbr.rel (0) target = $region61
    $region60: #{tpu_custom_call.1} parent=1 // pred_region
      %114 = dma.done [#allocation9], 1024
    $region61: #{tpu_custom_call.1} parent=1 // pred_fallthru
      _
    // Predicated region
    $region62: #{tpu_custom_call.1} parent=1 // pred_check
      _
    $region63: #{tpu_custom_call.1} parent=1 // pred_check_branch
      %116 = sbr.rel (0) target = $region65
    $region64: #{tpu_custom_call.1} parent=1 // pred_region
      %117 = dma.done [#allocation9], 1024
    $region65: #{tpu_custom_call.1} parent=1 // pred_fallthru
      _
    // Predicated region
    $region66: #{tpu_custom_call.1} parent=1 // pred_check
      _
    $region67: #{tpu_custom_call.1} parent=1 // pred_check_branch
      %119 = sbr.rel (0) target = $region69
    $region68: #{tpu_custom_call.1} parent=1 // pred_region
      %120 = dma.done [#allocation12], 1024
    $region69: #{tpu_custom_call.1} parent=1 // pred_fallthru
      _
    %v122 = vld [vmem:[#allocation2] sm:$0xf]
    %v123 = vld [vmem:[#allocation2 + $0x4] sm:$0xf]
    %v124 = vld [vmem:[#allocation5] sm:$0xff]
    %v125 = vld [vmem:[#allocation5 + $0x8] sm:$0xff]
    %v126 = vld [vmem:[%s2] sm:$0x3]
    %v128 = vlaneseq
    %v129 = vshrl.u32 %v128, 7
    %v130 = vsub.s32 0, %v129
    %v131 = vrot.slane %v126, %v130
    %v132 = vlaneseq
    %v133 = vshrl.u32 %v132, 7
    %v134 = vsub.s32 1, %v133
    %v135 = vrot.slane %v126, %v134
    %v140 = vunpack.c.l.b16 %v122
    %v141 = vunpack.c.l.b16 %v123
    %v142 = vpack.c.b16 %v141, %v140
    %v145 = vunpack.c.l.b16 %v124
    %v146 = vunpack.c.h.b16 %v124
    %v147 = vunpack.c.l.b16 %v125
    %v148 = vunpack.c.h.b16 %v125
    %v149 = vpack.c.b16 %v147, %v145
    %v150 = vpack.c.b16 %v148, %v146
    %vm153 = vcmask 130048
    %v155 = vsel %vm153, %v142, 0
    %157 = vmatprep.subr.bf16.mxu0 %v150
    %158 = vmatpush1.bf16.msra.mxu0 %v149
    %159 = vmatprep.subr.bf16.mxu0 0
    %160 = vmatpush1.bf16.msra.mxu0 0
    %161 = vmatprep.subr.bf16.mxu0 0
    %162 = vmatpush1.bf16.msra.mxu0 0
    %163 = vmatprep.subr.bf16.mxu0 0
    %164 = vmatpush1.bf16.msra.mxu0 0
    %165 = vmatprep.subr.bf16.mxu0 0
    %166 = vmatpush1.bf16.msra.mxu0 0
    %167 = vmatprep.subr.bf16.mxu0 0
    %168 = vmatpush1.bf16.msra.mxu0 0
    %169 = vmatprep.subr.bf16.mxu0 0
    %170 = vmatpush1.bf16.msra.mxu0 0
    %171 = vmatprep.subr.bf16.mxu0 0
    %172 = vmatpush1.bf16.msra.mxu0 0
    %173 = vmatprep.subr.bf16.mxu0 0
    %174 = vmatpush1.bf16.msra.mxu0 0
    %175 = vmatprep.subr.bf16.mxu0 0
    %176 = vmatpush1.bf16.msra.mxu0 0
    %177 = vmatprep.subr.bf16.mxu0 0
    %178 = vmatpush1.bf16.msra.mxu0 0
    %179 = vmatprep.subr.bf16.mxu0 0
    %180 = vmatpush1.bf16.msra.mxu0 0
    %181 = vmatprep.subr.bf16.mxu0 0
    %182 = vmatpush1.bf16.msra.mxu0 0
    %183 = vmatprep.subr.bf16.mxu0 0
    %184 = vmatpush1.bf16.msra.mxu0 0
    %185 = vmatprep.subr.bf16.mxu0 0
    %186 = vmatpush1.bf16.msra.mxu0 0
    %187 = vmatprep.subr.bf16.mxu0 0
    %188 = vmatpush1.bf16.msra.mxu0 0
    %189 = vmatprep.mubr.bf16.mxu0 0
    %190 = vmatmul.mubr.bf16.gmra.mrb[0].mxu0 %v155
    %v191 = vpop.f32.mrb[0].mxu0
    %v192 = vadd.f32 %v131, %v191
    %v193 = vpop.f32.mrb[0].mxu0
    %v194 = vadd.f32 %v135, %v193
    %v195 = vpop.f32.mrb[0].mxu0
    %v196 = vadd.f32 %v131, %v195
    %v197 = vpop.f32.mrb[0].mxu0
    %v198 = vadd.f32 %v135, %v197
    %199 = vdwg.mxu0
    %v200 = vmax.f32 %v192, 0.0
    %v201 = vmax.f32 %v194, 0.0
    %v202 = vmax.f32 %v196, 0.0
    %v203 = vmax.f32 %v198, 0.0
    %v204 = vpack.c.bf16 %v202, %v200
    %v205 = vpack.c.bf16 %v203, %v201
    %v206 = vld [vmem:[#allocation7] sm:$0xf]
    %v207 = vld [vmem:[#allocation7 + $0x4] sm:$0xf]
    %v208 = vld [vmem:[#allocation7 + $0x8] sm:$0xf]
    %v209 = vld [vmem:[#allocation7 + $0xc] sm:$0xf]
    %v210 = vld [vmem:[#allocation7 + $0x10] sm:$0xf]
    %v211 = vld [vmem:[#allocation7 + $0x14] sm:$0xf]
    %v212 = vld [vmem:[#allocation7 + $0x18] sm:$0xf]
    %v213 = vld [vmem:[#allocation7 + $0x1c] sm:$0xf]
    %v214 = vld [vmem:[#allocation7 + $0x20] sm:$0xf]
    %v215 = vld [vmem:[#allocation7 + $0x24] sm:$0xf]
    %v216 = vld [vmem:[#allocation7 + $0x28] sm:$0xf]
    %v217 = vld [vmem:[#allocation7 + $0x2c] sm:$0xf]
    %v218 = vld [vmem:[#allocation7 + $0x30] sm:$0xf]
    %v219 = vld [vmem:[#allocation7 + $0x34] sm:$0xf]
    %v220 = vld [vmem:[#allocation7 + $0x38] sm:$0xf]
    %v221 = vld [vmem:[#allocation7 + $0x3c] sm:$0xf]
    %v222 = vld [vmem:[#allocation7 + $0x40] sm:$0xf]
    %v223 = vld [vmem:[#allocation7 + $0x44] sm:$0xf]
    %v224 = vld [vmem:[#allocation7 + $0x48] sm:$0xf]
    %v225 = vld [vmem:[#allocation7 + $0x4c] sm:$0xf]
    %v226 = vld [vmem:[#allocation7 + $0x50] sm:$0xf]
    %v227 = vld [vmem:[#allocation7 + $0x54] sm:$0xf]
    %v228 = vld [vmem:[#allocation7 + $0x58] sm:$0xf]
    %v229 = vld [vmem:[#allocation7 + $0x5c] sm:$0xf]
    %v230 = vld [vmem:[#allocation7 + $0x60] sm:$0xf]
    %v231 = vld [vmem:[#allocation7 + $0x64] sm:$0xf]
    %v232 = vld [vmem:[#allocation7 + $0x68] sm:$0xf]
    %v233 = vld [vmem:[#allocation7 + $0x6c] sm:$0xf]
    %v234 = vld [vmem:[#allocation7 + $0x70] sm:$0xf]
    %v235 = vld [vmem:[#allocation7 + $0x74] sm:$0xf]
    %v236 = vld [vmem:[#allocation7 + $0x78] sm:$0xf]
    %v237 = vld [vmem:[#allocation7 + $0x7c] sm:$0xf]
    %v238 = vld [vmem:[%s4] sm:$0x1]
    %v240 = vlaneseq
    %v241 = vshrl.u32 %v240, 7
    %v242 = vsub.s32 0, %v241
    %v243 = vrot.slane %v238, %v242
    %v277 = vunpack.c.l.b16 %v206
    %v278 = vunpack.c.l.b16 %v207
    %v279 = vunpack.c.l.b16 %v208
    %v280 = vunpack.c.l.b16 %v209
    %v281 = vunpack.c.l.b16 %v210
    %v282 = vunpack.c.l.b16 %v211
    %v283 = vunpack.c.l.b16 %v212
    %v284 = vunpack.c.l.b16 %v213
    %v285 = vunpack.c.l.b16 %v214
    %v286 = vunpack.c.l.b16 %v215
    %v287 = vunpack.c.l.b16 %v216
    %v288 = vunpack.c.l.b16 %v217
    %v289 = vunpack.c.l.b16 %v218
    %v290 = vunpack.c.l.b16 %v219
    %v291 = vunpack.c.l.b16 %v220
    %v292 = vunpack.c.l.b16 %v221
    %v293 = vunpack.c.l.b16 %v222
    %v294 = vunpack.c.l.b16 %v223
    %v295 = vunpack.c.l.b16 %v224
    %v296 = vunpack.c.l.b16 %v225
    %v297 = vunpack.c.l.b16 %v226
    %v298 = vunpack.c.l.b16 %v227
    %v299 = vunpack.c.l.b16 %v228
    %v300 = vunpack.c.l.b16 %v229
    %v301 = vunpack.c.l.b16 %v230
    %v302 = vunpack.c.l.b16 %v231
    %v303 = vunpack.c.l.b16 %v232
    %v304 = vunpack.c.l.b16 %v233
    %v305 = vunpack.c.l.b16 %v234
    %v306 = vunpack.c.l.b16 %v235
    %v307 = vunpack.c.l.b16 %v236
    %v308 = vunpack.c.l.b16 %v237
    %v309 = vpack.c.b16 %v278, %v277
    %v310 = vpack.c.b16 %v280, %v279
    %v311 = vpack.c.b16 %v282, %v281
    %v312 = vpack.c.b16 %v284, %v283
    %v313 = vpack.c.b16 %v286, %v285
    %v314 = vpack.c.b16 %v288, %v287
    %v315 = vpack.c.b16 %v290, %v289
    %v316 = vpack.c.b16 %v292, %v291
    %v317 = vpack.c.b16 %v294, %v293
    %v318 = vpack.c.b16 %v296, %v295
    %v319 = vpack.c.b16 %v298, %v297
    %v320 = vpack.c.b16 %v300, %v299
    %v321 = vpack.c.b16 %v302, %v301
    %v322 = vpack.c.b16 %v304, %v303
    %v323 = vpack.c.b16 %v306, %v305
    %v324 = vpack.c.b16 %v308, %v307
    %341 = vmatprep.subr.bf16.mxu0 0
    %342 = vmatpush1.bf16.msra.mxu0 %v309
    %343 = vmatprep.subr.bf16.mxu0 0
    %344 = vmatpush1.bf16.msra.mxu0 %v310
    %345 = vmatprep.subr.bf16.mxu0 0
    %346 = vmatpush1.bf16.msra.mxu0 %v311
    %347 = vmatprep.subr.bf16.mxu0 0
    %348 = vmatpush1.bf16.msra.mxu0 %v312
    %349 = vmatprep.subr.bf16.mxu0 0
    %350 = vmatpush1.bf16.msra.mxu0 %v313
    %351 = vmatprep.subr.bf16.mxu0 0
    %352 = vmatpush1.bf16.msra.mxu0 %v314
    %353 = vmatprep.subr.bf16.mxu0 0
    %354 = vmatpush1.bf16.msra.mxu0 %v315
    %355 = vmatprep.subr.bf16.mxu0 0
    %356 = vmatpush1.bf16.msra.mxu0 %v316
    %357 = vmatprep.subr.bf16.mxu0 0
    %358 = vmatpush1.bf16.msra.mxu0 %v317
    %359 = vmatprep.subr.bf16.mxu0 0
    %360 = vmatpush1.bf16.msra.mxu0 %v318
    %361 = vmatprep.subr.bf16.mxu0 0
    %362 = vmatpush1.bf16.msra.mxu0 %v319
    %363 = vmatprep.subr.bf16.mxu0 0
    %364 = vmatpush1.bf16.msra.mxu0 %v320
    %365 = vmatprep.subr.bf16.mxu0 0
    %366 = vmatpush1.bf16.msra.mxu0 %v321
    %367 = vmatprep.subr.bf16.mxu0 0
    %368 = vmatpush1.bf16.msra.mxu0 %v322
    %369 = vmatprep.subr.bf16.mxu0 0
    %370 = vmatpush1.bf16.msra.mxu0 %v323
    %371 = vmatprep.subr.bf16.mxu0 0
    %372 = vmatpush1.bf16.msra.mxu0 %v324
    %373 = vmatprep.mubr.bf16.mxu0 %v205
    %374 = vmatmul.mubr.bf16.gmra.mrb[0].mxu0 %v204
    %v375 = vpop.f32.mrb[0].mxu0
    %v376 = vadd.f32 %v243, %v375
    %v377 = vpop.f32.mrb[0].mxu0
    %v378 = vpop.f32.mrb[0].mxu0
    %v379 = vadd.f32 %v243, %v378
    %v380 = vpop.f32.mrb[0].mxu0
    %381 = vdwg.mxu0
    %v382 = vmax.f32 %v376, 0.0
    %v383 = vmax.f32 %v379, 0.0
    %v384 = vpack.c.bf16 %v383, %v382
    %v385 = vld [vmem:[#allocation8] sm:$0xf]
    %v386 = vld [vmem:[#allocation8 + $0x4] sm:$0xf]
    %v387 = vld [vmem:[#allocation8 + $0x8] sm:$0xf]
    %v388 = vld [vmem:[#allocation8 + $0xc] sm:$0xf]
    %v389 = vld [vmem:[#allocation8 + $0x10] sm:$0xf]
    %v390 = vld [vmem:[#allocation8 + $0x14] sm:$0xf]
    %v391 = vld [vmem:[#allocation8 + $0x18] sm:$0xf]
    %v392 = vld [vmem:[#allocation8 + $0x1c] sm:$0xf]
    %v393 = vld [vmem:[#allocation8 + $0x20] sm:$0xf]
    %v394 = vld [vmem:[#allocation8 + $0x24] sm:$0xf]
    %v395 = vld [vmem:[#allocation8 + $0x28] sm:$0xf]
    %v396 = vld [vmem:[#allocation8 + $0x2c] sm:$0xf]
    %v397 = vld [vmem:[#allocation8 + $0x30] sm:$0xf]
    %v398 = vld [vmem:[#allocation8 + $0x34] sm:$0xf]
    %v399 = vld [vmem:[#allocation8 + $0x38] sm:$0xf]
    %v400 = vld [vmem:[#allocation8 + $0x3c] sm:$0xf]
    %v401 = vld [vmem:[%s6] sm:$0x1]
    %v403 = vlaneseq
    %v404 = vshrl.u32 %v403, 7
    %v405 = vsub.s32 0, %v404
    %v406 = vrot.slane %v401, %v405
    %v424 = vunpack.c.l.b16 %v385
    %v425 = vunpack.c.l.b16 %v386
    %v426 = vunpack.c.l.b16 %v387
    %v427 = vunpack.c.l.b16 %v388
    %v428 = vunpack.c.l.b16 %v389
    %v429 = vunpack.c.l.b16 %v390
    %v430 = vunpack.c.l.b16 %v391
    %v431 = vunpack.c.l.b16 %v392
    %v432 = vunpack.c.l.b16 %v393
    %v433 = vunpack.c.l.b16 %v394
    %v434 = vunpack.c.l.b16 %v395
    %v435 = vunpack.c.l.b16 %v396
    %v436 = vunpack.c.l.b16 %v397
    %v437 = vunpack.c.l.b16 %v398
    %v438 = vunpack.c.l.b16 %v399
    %v439 = vunpack.c.l.b16 %v400
    %v440 = vpack.c.b16 %v425, %v424
    %v441 = vpack.c.b16 %v427, %v426
    %v442 = vpack.c.b16 %v429, %v428
    %v443 = vpack.c.b16 %v431, %v430
    %v444 = vpack.c.b16 %v433, %v432
    %v445 = vpack.c.b16 %v435, %v434
    %v446 = vpack.c.b16 %v437, %v436
    %v447 = vpack.c.b16 %v439, %v438
    %456 = vmatprep.subr.bf16.mxu0 0
    %457 = vmatpush1.bf16.msra.mxu0 %v440
    %458 = vmatprep.subr.bf16.mxu0 0
    %459 = vmatpush1.bf16.msra.mxu0 %v441
    %460 = vmatprep.subr.bf16.mxu0 0
    %461 = vmatpush1.bf16.msra.mxu0 %v442
    %462 = vmatprep.subr.bf16.mxu0 0
    %463 = vmatpush1.bf16.msra.mxu0 %v443
    %464 = vmatprep.subr.bf16.mxu0 0
    %465 = vmatpush1.bf16.msra.mxu0 %v444
    %466 = vmatprep.subr.bf16.mxu0 0
    %467 = vmatpush1.bf16.msra.mxu0 %v445
    %468 = vmatprep.subr.bf16.mxu0 0
    %469 = vmatpush1.bf16.msra.mxu0 %v446
    %470 = vmatprep.subr.bf16.mxu0 0
    %471 = vmatpush1.bf16.msra.mxu0 %v447
    %472 = vmatprep.subr.bf16.mxu0 0
    %473 = vmatpush1.bf16.msra.mxu0 0
    %474 = vmatprep.subr.bf16.mxu0 0
    %475 = vmatpush1.bf16.msra.mxu0 0
    %476 = vmatprep.subr.bf16.mxu0 0
    %477 = vmatpush1.bf16.msra.mxu0 0
    %478 = vmatprep.subr.bf16.mxu0 0
    %479 = vmatpush1.bf16.msra.mxu0 0
    %480 = vmatprep.subr.bf16.mxu0 0
    %481 = vmatpush1.bf16.msra.mxu0 0
    %482 = vmatprep.subr.bf16.mxu0 0
    %483 = vmatpush1.bf16.msra.mxu0 0
    %484 = vmatprep.subr.bf16.mxu0 0
    %485 = vmatpush1.bf16.msra.mxu0 0
    %486 = vmatprep.subr.bf16.mxu0 0
    %487 = vmatpush1.bf16.msra.mxu0 0
    %488 = vmatprep.mubr.bf16.mxu0 0
    %489 = vmatmul.mubr.bf16.gmra.mrb[0].mxu0 %v384
    %v490 = vpop.f32.mrb[0].mxu0
    %v491 = vadd.f32 %v406, %v490
    %v492 = vpop.f32.mrb[0].mxu0
    %v493 = vpop.f32.mrb[0].mxu0
    %v494 = vadd.f32 %v406, %v493
    %v495 = vpop.f32.mrb[0].mxu0
    %496 = vdwg.mxu0
    %v497 = vmax.f32 %v491, 0.0
    %v498 = vmax.f32 %v494, 0.0
    %v499 = vpack.c.bf16 %v498, %v497
    %v500 = vld [vmem:[#allocation10] sm:$0xf]
    %v501 = vld [vmem:[#allocation10 + $0x4] sm:$0xf]
    %v502 = vld [vmem:[#allocation10 + $0x8] sm:$0xf]
    %v503 = vld [vmem:[#allocation10 + $0xc] sm:$0xf]
    %v504 = vld [vmem:[#allocation10 + $0x10] sm:$0xf]
    %v505 = vld [vmem:[#allocation10 + $0x14] sm:$0xf]
    %v506 = vld [vmem:[#allocation10 + $0x18] sm:$0xf]
    %v507 = vld [vmem:[#allocation10 + $0x1c] sm:$0xf]
    %v508 = vld [vmem:[#allocation10 + $0x20] sm:$0xf]
    %v509 = vld [vmem:[#allocation10 + $0x24] sm:$0xf]
    %v510 = vld [vmem:[#allocation10 + $0x28] sm:$0xf]
    %v511 = vld [vmem:[#allocation10 + $0x2c] sm:$0xf]
    %v512 = vld [vmem:[#allocation10 + $0x30] sm:$0xf]
    %v513 = vld [vmem:[#allocation10 + $0x34] sm:$0xf]
    %v514 = vld [vmem:[#allocation10 + $0x38] sm:$0xf]
    %v515 = vld [vmem:[#allocation10 + $0x3c] sm:$0xf]
    %v516 = vld [vmem:[%s8] sm:$0x1]
    %v518 = vlaneseq
    %v519 = vshrl.u32 %v518, 7
    %v520 = vsub.s32 0, %v519
    %v521 = vrot.slane %v516, %v520
    %v539 = vunpack.c.l.b16 %v500
    %v540 = vunpack.c.l.b16 %v501
    %v541 = vunpack.c.l.b16 %v502
    %v542 = vunpack.c.l.b16 %v503
    %v543 = vunpack.c.l.b16 %v504
    %v544 = vunpack.c.l.b16 %v505
    %v545 = vunpack.c.l.b16 %v506
    %v546 = vunpack.c.l.b16 %v507
    %v547 = vunpack.c.l.b16 %v508
    %v548 = vunpack.c.l.b16 %v509
    %v549 = vunpack.c.l.b16 %v510
    %v550 = vunpack.c.l.b16 %v511
    %v551 = vunpack.c.l.b16 %v512
    %v552 = vunpack.c.l.b16 %v513
    %v553 = vunpack.c.l.b16 %v514
    %v554 = vunpack.c.l.b16 %v515
    %v555 = vpack.c.b16 %v540, %v539
    %v556 = vpack.c.b16 %v542, %v541
    %v557 = vpack.c.b16 %v544, %v543
    %v558 = vpack.c.b16 %v546, %v545
    %v559 = vpack.c.b16 %v548, %v547
    %v560 = vpack.c.b16 %v550, %v549
    %v561 = vpack.c.b16 %v552, %v551
    %v562 = vpack.c.b16 %v554, %v553
    %571 = vmatprep.subr.bf16.mxu0 0
    %572 = vmatpush1.bf16.msra.mxu0 %v555
    %573 = vmatprep.subr.bf16.mxu0 0
    %574 = vmatpush1.bf16.msra.mxu0 %v556
    %575 = vmatprep.subr.bf16.mxu0 0
    %576 = vmatpush1.bf16.msra.mxu0 %v557
    %577 = vmatprep.subr.bf16.mxu0 0
    %578 = vmatpush1.bf16.msra.mxu0 %v558
    %579 = vmatprep.subr.bf16.mxu0 0
    %580 = vmatpush1.bf16.msra.mxu0 %v559
    %581 = vmatprep.subr.bf16.mxu0 0
    %582 = vmatpush1.bf16.msra.mxu0 %v560
    %583 = vmatprep.subr.bf16.mxu0 0
    %584 = vmatpush1.bf16.msra.mxu0 %v561
    %585 = vmatprep.subr.bf16.mxu0 0
    %586 = vmatpush1.bf16.msra.mxu0 %v562
    %587 = vmatprep.subr.bf16.mxu0 0
    %588 = vmatpush1.bf16.msra.mxu0 0
    %589 = vmatprep.subr.bf16.mxu0 0
    %590 = vmatpush1.bf16.msra.mxu0 0
    %591 = vmatprep.subr.bf16.mxu0 0
    %592 = vmatpush1.bf16.msra.mxu0 0
    %593 = vmatprep.subr.bf16.mxu0 0
    %594 = vmatpush1.bf16.msra.mxu0 0
    %595 = vmatprep.subr.bf16.mxu0 0
    %596 = vmatpush1.bf16.msra.mxu0 0
    %597 = vmatprep.subr.bf16.mxu0 0
    %598 = vmatpush1.bf16.msra.mxu0 0
    %599 = vmatprep.subr.bf16.mxu0 0
    %600 = vmatpush1.bf16.msra.mxu0 0
    %601 = vmatprep.subr.bf16.mxu0 0
    %602 = vmatpush1.bf16.msra.mxu0 0
    %603 = vmatprep.mubr.bf16.mxu0 0
    %604 = vmatmul.mubr.bf16.gmra.mrb[0].mxu0 %v499
    %v605 = vpop.f32.mrb[0].mxu0
    %v606 = vadd.f32 %v521, %v605
    %v607 = vpop.f32.mrb[0].mxu0
    %v608 = vpop.f32.mrb[0].mxu0
    %v609 = vadd.f32 %v521, %v608
    %v610 = vpop.f32.mrb[0].mxu0
    %611 = vdwg.mxu0
    %v612 = vmax.f32 %v606, 0.0
    %v613 = vmax.f32 %v609, 0.0
    %v614 = vpack.c.bf16 %v613, %v612
    %v615 = vld [vmem:[#allocation11] sm:$0xf]
    %v616 = vld [vmem:[#allocation11 + $0x4] sm:$0xf]
    %v617 = vld [vmem:[#allocation11 + $0x8] sm:$0xf]
    %v618 = vld [vmem:[#allocation11 + $0xc] sm:$0xf]
    %v619 = vld [vmem:[#allocation11 + $0x10] sm:$0xf]
    %v620 = vld [vmem:[#allocation11 + $0x14] sm:$0xf]
    %v621 = vld [vmem:[#allocation11 + $0x18] sm:$0xf]
    %v622 = vld [vmem:[#allocation11 + $0x1c] sm:$0xf]
    %v623 = vld [vmem:[#allocation11 + $0x20] sm:$0xf]
    %v624 = vld [vmem:[#allocation11 + $0x24] sm:$0xf]
    %v625 = vld [vmem:[#allocation11 + $0x28] sm:$0xf]
    %v626 = vld [vmem:[#allocation11 + $0x2c] sm:$0xf]
    %v627 = vld [vmem:[#allocation11 + $0x30] sm:$0xf]
    %v628 = vld [vmem:[#allocation11 + $0x34] sm:$0xf]
    %v629 = vld [vmem:[#allocation11 + $0x38] sm:$0xf]
    %v630 = vld [vmem:[#allocation11 + $0x3c] sm:$0xf]
    %v631 = vld [vmem:[%s10] sm:$0x1]
    %v633 = vlaneseq
    %v634 = vshrl.u32 %v633, 7
    %v635 = vsub.s32 0, %v634
    %v636 = vrot.slane %v631, %v635
    %v654 = vunpack.c.l.b16 %v615
    %v655 = vunpack.c.l.b16 %v616
    %v656 = vunpack.c.l.b16 %v617
    %v657 = vunpack.c.l.b16 %v618
    %v658 = vunpack.c.l.b16 %v619
    %v659 = vunpack.c.l.b16 %v620
    %v660 = vunpack.c.l.b16 %v621
    %v661 = vunpack.c.l.b16 %v622
    %v662 = vunpack.c.l.b16 %v623
    %v663 = vunpack.c.l.b16 %v624
    %v664 = vunpack.c.l.b16 %v625
    %v665 = vunpack.c.l.b16 %v626
    %v666 = vunpack.c.l.b16 %v627
    %v667 = vunpack.c.l.b16 %v628
    %v668 = vunpack.c.l.b16 %v629
    %v669 = vunpack.c.l.b16 %v630
    %v670 = vpack.c.b16 %v655, %v654
    %v671 = vpack.c.b16 %v657, %v656
    %v672 = vpack.c.b16 %v659, %v658
    %v673 = vpack.c.b16 %v661, %v660
    %v674 = vpack.c.b16 %v663, %v662
    %v675 = vpack.c.b16 %v665, %v664
    %v676 = vpack.c.b16 %v667, %v666
    %v677 = vpack.c.b16 %v669, %v668
    %686 = vmatprep.subr.bf16.mxu0 0
    %687 = vmatpush1.bf16.msra.mxu0 %v670
    %688 = vmatprep.subr.bf16.mxu0 0
    %689 = vmatpush1.bf16.msra.mxu0 %v671
    %690 = vmatprep.subr.bf16.mxu0 0
    %691 = vmatpush1.bf16.msra.mxu0 %v672
    %692 = vmatprep.subr.bf16.mxu0 0
    %693 = vmatpush1.bf16.msra.mxu0 %v673
    %694 = vmatprep.subr.bf16.mxu0 0
    %695 = vmatpush1.bf16.msra.mxu0 %v674
    %696 = vmatprep.subr.bf16.mxu0 0
    %697 = vmatpush1.bf16.msra.mxu0 %v675
    %698 = vmatprep.subr.bf16.mxu0 0
    %699 = vmatpush1.bf16.msra.mxu0 %v676
    %700 = vmatprep.subr.bf16.mxu0 0
    %701 = vmatpush1.bf16.msra.mxu0 %v677
    %702 = vmatprep.subr.bf16.mxu0 0
    %703 = vmatpush1.bf16.msra.mxu0 0
    %704 = vmatprep.subr.bf16.mxu0 0
    %705 = vmatpush1.bf16.msra.mxu0 0
    %706 = vmatprep.subr.bf16.mxu0 0
    %707 = vmatpush1.bf16.msra.mxu0 0
    %708 = vmatprep.subr.bf16.mxu0 0
    %709 = vmatpush1.bf16.msra.mxu0 0
    %710 = vmatprep.subr.bf16.mxu0 0
    %711 = vmatpush1.bf16.msra.mxu0 0
    %712 = vmatprep.subr.bf16.mxu0 0
    %713 = vmatpush1.bf16.msra.mxu0 0
    %714 = vmatprep.subr.bf16.mxu0 0
    %715 = vmatpush1.bf16.msra.mxu0 0
    %716 = vmatprep.subr.bf16.mxu0 0
    %717 = vmatpush1.bf16.msra.mxu0 0
    %718 = vmatprep.mubr.bf16.mxu0 0
    %719 = vmatmul.mubr.bf16.gmra.mrb[0].mxu0 %v614
    %v720 = vpop.f32.mrb[0].mxu0
    %v721 = vadd.f32 %v636, %v720
    %v722 = vpop.f32.mrb[0].mxu0
    %v723 = vpop.f32.mrb[0].mxu0
    %v724 = vadd.f32 %v636, %v723
    %v725 = vpop.f32.mrb[0].mxu0
    %726 = vdwg.mxu0
    %v727 = vpack.c.bf16 %v724, %v721
    %v729 = vunpack.c.l.b16 %v727
    %v730 = vunpack.c.h.b16 %v727
    %v731 = vpack.c.b16 %v729, %v729
    %v732 = vpack.c.b16 %v730, %v730
    %735 = vst [vmem:[#allocation13] sm:$0xf] %v731
    %736 = vst [vmem:[#allocation13 + $0x4] sm:$0xf] %v732
    // Predicated region
    $region70: #{tpu_custom_call.1} parent=1 // pred_check
      _
    $region71: #{tpu_custom_call.1} parent=1 // pred_check_branch
      %738 = sbr.rel (0) target = $region73
    $region72: #{tpu_custom_call.1} parent=1 // pred_region
      %s740 = ssub.s32 128, 128
      %741 = vsyncadd [#allocation4], %s740
      %s742 = sshll.u32 [#allocation13], 4
      %s743 = int_to_ptr.vmem [resolvable:$true] %s742
      %748 = dma.vmem_to_hbm [thread:$0]  %s743, 128, %s11, [#allocation4], 64, 64, 4
    $region73: #{tpu_custom_call.1} parent=1 // pred_fallthru
      _
    // Predicated region
    $region74: #{tpu_custom_call.1} parent=1 // pred_check
      _
    $region75: #{tpu_custom_call.1} parent=1 // pred_check_branch
      %750 = sbr.rel (0) target = $region77
    $region76: #{tpu_custom_call.1} parent=1 // pred_region
      %751 = dma.done [#allocation4], 128
    $region77: #{tpu_custom_call.1} parent=1 // pred_fallthru
      _
    %752 = vsyncpa [#allocation3], 1
    %753 = vsyncpa [#allocation6], 1
    %754 = vsyncpa [#allocation9], 1
    %755 = vsyncpa [#allocation12], 1
    %756 = vsyncpa [#allocation4], 1

</llo_original>
